<compile_context>
chip_gen: v7x
topology: tpu7x:2x2x1
jax: 0.10.0
libtpu: 0.0.40
codegen_flags: <defaults>
</compile_context>

<pallas_src>
import functools

import jax
import jax.numpy as jnp
from jax.experimental import pallas as pl
from jax.experimental.pallas import tpu as pltpu


def _softplus(x):
    # Stable softplus; matches torch.nn.Softplus(beta=1, threshold=20) to <1e-8
    # (for x > 20 the log1p term is < 2e-9).
    return jnp.maximum(x, 0.0) + jnp.log1p(jnp.exp(-jnp.abs(x)))


def _mlp_kernel(n_layers, in_size, vpu_first, bf16_layers, *refs):
    # refs = (x_ref, w0, b0, ..., w{L-2}, b{L-2}, w_head, b_head, o_ref)
    # Hidden weights are (in, out), hidden biases (1, out).
    # Head weight is passed TRANSPOSED as (1, h_last); head bias as (1, 1).
    x_ref = refs[0]
    o_ref = refs[-1]
    p = refs[1:-1]

    h = x_ref[...]                                   # (tm, in_size) f32

    # ---- hidden layers: Linear -> Softplus -------------------------------
    for i in range(n_layers - 1):
        w = p[2 * i][...]
        b = p[2 * i + 1][...]                        # (1, out), broadcasts over rows
        if i == 0 and vpu_first:
            # Tiny K (e.g. 4): unrolled broadcast FMAs on the VPU, no MXU pass.
            z = b + h[:, 0:1] * w[0:1, :]
            for k in range(1, in_size):
                z = z + h[:, k:k + 1] * w[k:k + 1, :]
            h = z
        elif bf16_layers[i]:
            h = jnp.dot(h.astype(jnp.bfloat16), w.astype(jnp.bfloat16),
                        preferred_element_type=jnp.float32) + b
        else:
            h = jnp.dot(h, w, preferred_element_type=jnp.float32) + b
        h = _softplus(h)                             # softplus always in f32

    # ---- head (out_size == 1): VPU multiply + XLU lane-reduce -> (tm, 1) --
    w_head = p[2 * (n_layers - 1)][...]              # (1, h_last)
    b_head = p[2 * (n_layers - 1) + 1][...]          # (1, 1)
    out = jnp.sum(h * w_head, axis=-1, keepdims=True) + b_head
    o_ref[...] = out.astype(o_ref.dtype)             # narrow (tm, 1) store


def _round_up(n, m):
    return ((n + m - 1) // m) * m


def _choose_tm(B, tm_req):
    """Rows per grid step: sublane-aligned, capped at B, even step count if >1."""
    tm = max(8, min(tm_req, _round_up(B, 8)))
    if B > tm:
        steps = -(-B // tm)
        if steps % 2 == 1:
            steps += 1                               # v7x: even split over 2 TCs
        tm = _round_up(-(-B // steps), 8)
    return tm


def value_model_forward(x, params, *, tm=2048, bf16_min_dim=128):
    """x: (B, input_size) f32. params: list of (W (in,out), b (out,)) f32.

    Returns (B, 1) f32, identical to the PyTorch Sequential forward.
    """
    B, in_size = x.shape
    n_layers = len(params)
    out_size = params[-1][0].shape[1]
    assert out_size == 1, "ValueModel head must be 1-wide"

    tm = _choose_tm(B, tm)
    grid = (-(-B // tm),)                            # ragged last block is fine

    flat_args = [x]
    in_specs = [pl.BlockSpec((tm, in_size), lambda i: (i, 0))]
    bf16_layers = []
    for li, (w, b) in enumerate(params):
        if li == n_layers - 1:
            # Head weight transposed to (1, h_last) + (1, 1) bias so the kernel
            # does a broadcast multiply + lane reduce, not a padded MXU matmul.
            flat_args.append(w.reshape(1, -1))
            flat_args.append(b.reshape(1, 1))
            in_specs.append(pl.BlockSpec((1, w.shape[0]), lambda i: (0, 0)))
            in_specs.append(pl.BlockSpec((1, 1), lambda i: (0, 0)))
        else:
            flat_args.append(w)
            flat_args.append(b.reshape(1, -1))
            # Constant index_map -> weights/biases stay VMEM-resident across steps.
            in_specs.append(pl.BlockSpec(w.shape, lambda i: (0, 0)))
            in_specs.append(pl.BlockSpec((1, w.shape[1]), lambda i: (0, 0)))
        # bf16 MXU inputs only once both matmul dims are non-trivial; the demo's
        # 32-wide layers stay f32 (exact vs reference).  On v6e/v7x this gate can
        # be lowered (e.g. 32) if the caller's tolerance allows.
        bf16_layers.append(bool(min(w.shape) >= bf16_min_dim))

    vpu_first = in_size <= 8                         # skip MXU for K=4 input layer
    kernel = functools.partial(_mlp_kernel, n_layers, in_size,
                               vpu_first, tuple(bf16_layers))

    return pl.pallas_call(
        kernel,
        out_shape=jax.ShapeDtypeStruct((B, 1), jnp.float32),
        grid=grid,
        in_specs=in_specs,
        out_specs=pl.BlockSpec((tm, 1), lambda i: (i, 0)),
        compiler_params=pltpu.CompilerParams(
            dimension_semantics=("parallel",),       # v7x: 2 TCs split the batch
        ),
    )(*flat_args)


def init_value_model_params(key, input_size, hidden_layer_sizes):
    """Xavier-normal weights, zero biases (matches the PyTorch __init__)."""
    sizes = [input_size] + list(hidden_layer_sizes) + [1]
    params = []
    for i in range(len(sizes) - 1):
        fan_in, fan_out = sizes[i], sizes[i + 1]
        key, sub = jax.random.split(key)
        std = (2.0 / (fan_in + fan_out)) ** 0.5
        w = std * jax.random.normal(sub, (fan_in, fan_out), dtype=jnp.float32)
        b = jnp.zeros((fan_out,), dtype=jnp.float32)
        params.append((w, b))
    return params


if __name__ == "__main__":
    key = jax.random.PRNGKey(0)

    # CartPole-like setup: state dim 4, two hidden layers of 32.
    input_size = 4
    hidden_layer_sizes = [32, 32]

    key, pkey = jax.random.split(key)
    params = init_value_model_params(pkey, input_size, hidden_layer_sizes)

    def reference(xs, ps):
        h = xs
        for i, (w, b) in enumerate(ps):
            h = jnp.dot(h, w, precision=jax.lax.Precision.HIGHEST) + b
            if i != len(ps) - 1:
                h = _softplus(h)
        return h

    # Small spec-consistent case (predict on a couple of states).
    key, xkey = jax.random.split(key)
    x_small = jax.random.normal(xkey, (2, input_size), dtype=jnp.float32)
    out_small = jax.block_until_ready(value_model_forward(x_small, params))
    assert out_small.shape == (2, 1)
    assert jnp.allclose(out_small, reference(x_small, params), atol=1e-5, rtol=1e-5)

    # Larger non-divisible batch exercising the ragged tiled grid (4 balanced steps).
    key, xkey = jax.random.split(key)
    x_big = jax.random.normal(xkey, (1037, input_size), dtype=jnp.float32)
    out_big = jax.block_until_ready(value_model_forward(x_big, params, tm=512))
    assert out_big.shape == (1037, 1)
    assert jnp.allclose(out_big, reference(x_big, params), atol=1e-5, rtol=1e-5)

    # Default (big-tile) path: single fat grid step.
    out_big2 = jax.block_until_ready(value_model_forward(x_big, params))
    assert jnp.allclose(out_big2, reference(x_big, params), atol=1e-5, rtol=1e-5)

    print("KERNEL_OK")
</pallas_src>

<mosaic_0001>
module attributes {stable_mosaic.version = 11 : i64} {
  func.func @_mlp_kernel(%arg0: i32, %arg1: memref<8x4xf32, #tpu.memory_space<vmem>>, %arg2: memref<4x32xf32, #tpu.memory_space<vmem>>, %arg3: memref<1x32xf32, #tpu.memory_space<vmem>>, %arg4: memref<32x32xf32, #tpu.memory_space<vmem>>, %arg5: memref<1x32xf32, #tpu.memory_space<vmem>>, %arg6: memref<1x32xf32, #tpu.memory_space<vmem>>, %arg7: memref<1x1xf32, #tpu.memory_space<vmem>>, %arg8: memref<8x1xf32, #tpu.memory_space<vmem>>) attributes {dimension_semantics = [#tpu.dimension_semantics<parallel>], iteration_bounds = array<i64: 1>, scalar_prefetch = 0 : i64, scratch_operands = 0 : i64, tpu.core_type = #tpu.core_type<tc>, window_params = [{transform_indices = @transform_0, window_bounds = array<i64: 8, 4>}, {pipeline_mode = #tpu.pipeline_mode<synchronous>, transform_indices = @transform_1, window_bounds = array<i64: 4, 32>}, {pipeline_mode = #tpu.pipeline_mode<synchronous>, transform_indices = @transform_2, window_bounds = array<i64: 1, 32>}, {pipeline_mode = #tpu.pipeline_mode<synchronous>, transform_indices = @transform_3, window_bounds = array<i64: 32, 32>}, {pipeline_mode = #tpu.pipeline_mode<synchronous>, transform_indices = @transform_4, window_bounds = array<i64: 1, 32>}, {pipeline_mode = #tpu.pipeline_mode<synchronous>, transform_indices = @transform_5, window_bounds = array<i64: 1, 32>}, {pipeline_mode = #tpu.pipeline_mode<synchronous>, transform_indices = @transform_6, window_bounds = array<i64: 1, 1>}, {transform_indices = @transform_7, window_bounds = array<i64: 8, 1>}]} {
    %c0 = arith.constant 0 : index
    %c0_0 = arith.constant 0 : index
    %0 = vector.load %arg1[%c0, %c0_0] : memref<8x4xf32, #tpu.memory_space<vmem>>, vector<8x4xf32>
    %c0_1 = arith.constant 0 : index
    %c0_2 = arith.constant 0 : index
    %1 = vector.load %arg2[%c0_1, %c0_2] : memref<4x32xf32, #tpu.memory_space<vmem>>, vector<4x32xf32>
    %c0_3 = arith.constant 0 : index
    %c0_4 = arith.constant 0 : index
    %2 = vector.load %arg3[%c0_3, %c0_4] : memref<1x32xf32, #tpu.memory_space<vmem>>, vector<1x32xf32>
    %3 = vector.extract_strided_slice %0 {offsets = [0, 0], sizes = [8, 1], strides = [1, 1]} : vector<8x4xf32> to vector<8x1xf32>
    %4 = vector.extract_strided_slice %1 {offsets = [0, 0], sizes = [1, 32], strides = [1, 1]} : vector<4x32xf32> to vector<1x32xf32>
    %5 = vector.broadcast %3 : vector<8x1xf32> to vector<8x32xf32>
    %6 = vector.broadcast %4 : vector<1x32xf32> to vector<8x32xf32>
    %7 = arith.mulf %5, %6 : vector<8x32xf32>
    %8 = vector.broadcast %2 : vector<1x32xf32> to vector<8x32xf32>
    %9 = arith.addf %8, %7 : vector<8x32xf32>
    %10 = vector.extract_strided_slice %0 {offsets = [0, 1], sizes = [8, 1], strides = [1, 1]} : vector<8x4xf32> to vector<8x1xf32>
    %11 = vector.extract_strided_slice %1 {offsets = [1, 0], sizes = [1, 32], strides = [1, 1]} : vector<4x32xf32> to vector<1x32xf32>
    %12 = vector.broadcast %10 : vector<8x1xf32> to vector<8x32xf32>
    %13 = vector.broadcast %11 : vector<1x32xf32> to vector<8x32xf32>
    %14 = arith.mulf %12, %13 : vector<8x32xf32>
    %15 = arith.addf %9, %14 : vector<8x32xf32>
    %16 = vector.extract_strided_slice %0 {offsets = [0, 2], sizes = [8, 1], strides = [1, 1]} : vector<8x4xf32> to vector<8x1xf32>
    %17 = vector.extract_strided_slice %1 {offsets = [2, 0], sizes = [1, 32], strides = [1, 1]} : vector<4x32xf32> to vector<1x32xf32>
    %18 = vector.broadcast %16 : vector<8x1xf32> to vector<8x32xf32>
    %19 = vector.broadcast %17 : vector<1x32xf32> to vector<8x32xf32>
    %20 = arith.mulf %18, %19 : vector<8x32xf32>
    %21 = arith.addf %15, %20 : vector<8x32xf32>
    %22 = vector.extract_strided_slice %0 {offsets = [0, 3], sizes = [8, 1], strides = [1, 1]} : vector<8x4xf32> to vector<8x1xf32>
    %23 = vector.extract_strided_slice %1 {offsets = [3, 0], sizes = [1, 32], strides = [1, 1]} : vector<4x32xf32> to vector<1x32xf32>
    %24 = vector.broadcast %22 : vector<8x1xf32> to vector<8x32xf32>
    %25 = vector.broadcast %23 : vector<1x32xf32> to vector<8x32xf32>
    %26 = arith.mulf %24, %25 : vector<8x32xf32>
    %27 = arith.addf %21, %26 : vector<8x32xf32>
    %cst = arith.constant 0.000000e+00 : f32
    %28 = vector.broadcast %cst : f32 to vector<8x32xf32>
    %29 = arith.maximumf %27, %28 : vector<8x32xf32>
    %30 = math.absf %27 : vector<8x32xf32>
    %cst_5 = arith.constant 0.000000e+00 : f32
    %31 = vector.broadcast %cst_5 : f32 to vector<8x32xf32>
    %32 = arith.subf %31, %30 : vector<8x32xf32>
    %33 = math.exp %32 : vector<8x32xf32>
    %34 = math.log1p %33 : vector<8x32xf32>
    %35 = arith.addf %29, %34 : vector<8x32xf32>
    %c0_6 = arith.constant 0 : index
    %c0_7 = arith.constant 0 : index
    %36 = vector.load %arg4[%c0_6, %c0_7] : memref<32x32xf32, #tpu.memory_space<vmem>>, vector<32x32xf32>
    %c0_8 = arith.constant 0 : index
    %c0_9 = arith.constant 0 : index
    %37 = vector.load %arg5[%c0_8, %c0_9] : memref<1x32xf32, #tpu.memory_space<vmem>>, vector<1x32xf32>
    %cst_10 = arith.constant dense<0.000000e+00> : vector<8x32xf32>
    %38 = tpu.matmul %35, %36, %cst_10 {dimension_numbers = #tpu.dot_dimension_numbers<[1], [0], [0], [1], [0, 0, 1, 1], [], []>} : vector<8x32xf32>, vector<32x32xf32>, vector<8x32xf32> -> vector<8x32xf32>
    %39 = vector.broadcast %37 : vector<1x32xf32> to vector<8x32xf32>
    %40 = arith.addf %38, %39 : vector<8x32xf32>
    %cst_11 = arith.constant 0.000000e+00 : f32
    %41 = vector.broadcast %cst_11 : f32 to vector<8x32xf32>
    %42 = arith.maximumf %40, %41 : vector<8x32xf32>
    %43 = math.absf %40 : vector<8x32xf32>
    %cst_12 = arith.constant 0.000000e+00 : f32
    %44 = vector.broadcast %cst_12 : f32 to vector<8x32xf32>
    %45 = arith.subf %44, %43 : vector<8x32xf32>
    %46 = math.exp %45 : vector<8x32xf32>
    %47 = math.log1p %46 : vector<8x32xf32>
    %48 = arith.addf %42, %47 : vector<8x32xf32>
    %c0_13 = arith.constant 0 : index
    %c0_14 = arith.constant 0 : index
    %49 = vector.load %arg6[%c0_13, %c0_14] : memref<1x32xf32, #tpu.memory_space<vmem>>, vector<1x32xf32>
    %c0_15 = arith.constant 0 : index
    %c0_16 = arith.constant 0 : index
    %50 = vector.load %arg7[%c0_15, %c0_16] : memref<1x1xf32, #tpu.memory_space<vmem>>, vector<1x1xf32>
    %51 = vector.broadcast %49 : vector<1x32xf32> to vector<8x32xf32>
    %52 = arith.mulf %48, %51 : vector<8x32xf32>
    %cst_17 = arith.constant dense<0.000000e+00> : vector<8xf32>
    %53 = vector.multi_reduction <add>, %52, %cst_17 [1] : vector<8x32xf32> to vector<8xf32>
    %54 = vector.shape_cast %53 : vector<8xf32> to vector<8x1xf32>
    %55 = vector.broadcast %50 : vector<1x1xf32> to vector<8x1xf32>
    %56 = arith.addf %54, %55 : vector<8x1xf32>
    %c0_18 = arith.constant 0 : index
    %c0_19 = arith.constant 0 : index
    %57 = vector.load %arg8[%c0_18, %c0_19] : memref<8x1xf32, #tpu.memory_space<vmem>>, vector<8x1xf32>
    tpu.vector_store %arg8[%c0_18, %c0_19], %56 {strides = array<i32>} : memref<8x1xf32, #tpu.memory_space<vmem>>, vector<8x1xf32>,
    return
  }
  func.func @transform_0(%arg0: i32) -> (i32, i32) {
    %c0_i32 = arith.constant 0 : i32
    %c0_i32_0 = arith.constant 0 : i32
    return %arg0, %c0_i32 : i32, i32
  }
  func.func @transform_1(%arg0: i32) -> (i32, i32) {
    %c0_i32 = arith.constant 0 : i32
    %c0_i32_0 = arith.constant 0 : i32
    %c0_i32_1 = arith.constant 0 : i32
    return %c0_i32, %c0_i32_0 : i32, i32
  }
  func.func @transform_2(%arg0: i32) -> (i32, i32) {
    %c0_i32 = arith.constant 0 : i32
    %c0_i32_0 = arith.constant 0 : i32
    %c0_i32_1 = arith.constant 0 : i32
    return %c0_i32, %c0_i32_0 : i32, i32
  }
  func.func @transform_3(%arg0: i32) -> (i32, i32) {
    %c0_i32 = arith.constant 0 : i32
    %c0_i32_0 = arith.constant 0 : i32
    %c0_i32_1 = arith.constant 0 : i32
    return %c0_i32, %c0_i32_0 : i32, i32
  }
  func.func @transform_4(%arg0: i32) -> (i32, i32) {
    %c0_i32 = arith.constant 0 : i32
    %c0_i32_0 = arith.constant 0 : i32
    %c0_i32_1 = arith.constant 0 : i32
    return %c0_i32, %c0_i32_0 : i32, i32
  }
  func.func @transform_5(%arg0: i32) -> (i32, i32) {
    %c0_i32 = arith.constant 0 : i32
    %c0_i32_0 = arith.constant 0 : i32
    %c0_i32_1 = arith.constant 0 : i32
    return %c0_i32, %c0_i32_0 : i32, i32
  }
  func.func @transform_6(%arg0: i32) -> (i32, i32) {
    %c0_i32 = arith.constant 0 : i32
    %c0_i32_0 = arith.constant 0 : i32
    %c0_i32_1 = arith.constant 0 : i32
    return %c0_i32, %c0_i32_0 : i32, i32
  }
  func.func @transform_7(%arg0: i32) -> (i32, i32) {
    %c0_i32 = arith.constant 0 : i32
    %c0_i32_0 = arith.constant 0 : i32
    return %arg0, %c0_i32 : i32, i32
  }
}

</mosaic_0001>

<llo_original>
// kernel: tpu_custom_call.1
$region0: #{tpu_custom_call.1}
  #allocation0 [shape = 'u32[]', space=smem, size = 0x4, offset = 0x4, fixed_abs, tag = 'smem constant byte address 0x4 - core index']
  #allocation1 [shape = 'u32[144,128]{1,0:T(1,128)}', space=vmem, size = 0x12000, scoped, tag = 'internal scratch']
  #allocation2 [shape = 'f32[1,1]{1,0:T(1,128)S(1)}', space=vmem, size = 0x200, scoped, tag = 'scoped memory for tpu_custom_call.1']
  %s0 = inlined_call_operand.vmem [shape: f32[2,4], index: 0, kind: input, shape index: {}]
  %s1 = inlined_call_operand.vmem [shape: f32[4,32], index: 1, kind: input, shape index: {}]
  %s2 = inlined_call_operand.vmem [shape: f32[1,32], index: 2, kind: input, shape index: {}]
  %s3 = inlined_call_operand.hbm [shape: f32[32,32], index: 3, kind: input, shape index: {}]
  %s4 = inlined_call_operand.vmem [shape: f32[1,32], index: 4, kind: input, shape index: {}]
  %s5 = inlined_call_operand.vmem [shape: f32[1,32], index: 5, kind: input, shape index: {}]
  %s6 = inlined_call_operand.<no memory space> [shape: f32[1,1], index: 6, kind: input, shape index: {}]
  %s7 = inlined_call_operand.vmem [shape: f32[2,1], index: 7, kind: output, shape index: {}]
  %s8 = sld [smem:[#allocation0]]
  $region72: #{tpu_custom_call.1} parent=0
    _
  %s10 = ssub.s32 1, %s8
  %s11 = scalar_select 0, %s10, %s8
  %v12 = vstv %s6
  %13 = vst [vmem:[#allocation2] sm:$0x1] %v12
  $region1: #{tpu_custom_call.1} parent=0
    #allocation3 [shape = 'u8[16384]{0}', space=vmem, size = 0x4000, scoped, tag = 'input window, operand 3, single buffered']
    #allocation4 [shape = 's32[1]{0}', space=sflag, size = 0x4, scoped, tag = 'scoped memory for tpu_custom_call.1']
    #allocation5 [shape = 'u8[4096]{0}', space=vmem, size = 0x1000, scoped, tag = 'output window, operand 0, single buffered']
    %14 = vsyncpa [#allocation4], 0
    // Predicated region
    $region2: #{tpu_custom_call.1} parent=1 // pred_check
      _
    $region3: #{tpu_custom_call.1} parent=1 // pred_check_branch
      %16 = sbr.rel (0) target = $region5
    $region4: #{tpu_custom_call.1} parent=1 // pred_region
      _
    $region5: #{tpu_custom_call.1} parent=1 // pred_fallthru
      _
    // Predicated region
    $region6: #{tpu_custom_call.1} parent=1 // pred_check
      _
    $region7: #{tpu_custom_call.1} parent=1 // pred_check_branch
      %18 = sbr.rel (0) target = $region9
    $region8: #{tpu_custom_call.1} parent=1 // pred_region
      _
    $region9: #{tpu_custom_call.1} parent=1 // pred_fallthru
      _
    // Predicated region
    $region10: #{tpu_custom_call.1} parent=1 // pred_check
      _
    $region11: #{tpu_custom_call.1} parent=1 // pred_check_branch
      %20 = sbr.rel (0) target = $region13
    $region12: #{tpu_custom_call.1} parent=1 // pred_region
      _
    $region13: #{tpu_custom_call.1} parent=1 // pred_fallthru
      _
    // Predicated region
    $region14: #{tpu_custom_call.1} parent=1 // pred_check
      _
    $region15: #{tpu_custom_call.1} parent=1 // pred_check_branch
      %22 = sbr.rel (0) target = $region17
    $region16: #{tpu_custom_call.1} parent=1 // pred_region
      %s24 = ssub.s32 512, 512
      %25 = vsyncadd [#allocation4], %s24
      %s26 = sshll.u32 [#allocation3], 4
      %s27 = int_to_ptr.vmem [resolvable:$true] %s26
      %32 = dma.hbm_to_vmem [thread:$0]  %s3, 512, %s27, [#allocation4], 128, 128, 8
    $region17: #{tpu_custom_call.1} parent=1 // pred_fallthru
      _
    // Predicated region
    $region18: #{tpu_custom_call.1} parent=1 // pred_check
      _
    $region19: #{tpu_custom_call.1} parent=1 // pred_check_branch
      %34 = sbr.rel (0) target = $region21
    $region20: #{tpu_custom_call.1} parent=1 // pred_region
      _
    $region21: #{tpu_custom_call.1} parent=1 // pred_fallthru
      _
    // Predicated region
    $region22: #{tpu_custom_call.1} parent=1 // pred_check
      _
    $region23: #{tpu_custom_call.1} parent=1 // pred_check_branch
      %36 = sbr.rel (0) target = $region25
    $region24: #{tpu_custom_call.1} parent=1 // pred_region
      _
    $region25: #{tpu_custom_call.1} parent=1 // pred_fallthru
      _
    // Predicated region
    $region26: #{tpu_custom_call.1} parent=1 // pred_check
      _
    $region27: #{tpu_custom_call.1} parent=1 // pred_check_branch
      %38 = sbr.rel (0) target = $region29
    $region28: #{tpu_custom_call.1} parent=1 // pred_region
      _
    $region29: #{tpu_custom_call.1} parent=1 // pred_fallthru
      _
    // Predicated region
    $region30: #{tpu_custom_call.1} parent=1 // pred_check
      _
    $region31: #{tpu_custom_call.1} parent=1 // pred_check_branch
      %40 = sbr.rel (0) target = $region33
    $region32: #{tpu_custom_call.1} parent=1 // pred_region
      %41 = dma.done [#allocation4], 512
    $region33: #{tpu_custom_call.1} parent=1 // pred_fallthru
      _
    %v42 = vld [vmem:[%s0] sm:$0xff]
    %v43 = vld [vmem:[%s1] sm:$0xf]
    %v44 = vld [vmem:[%s2] sm:$0x1]
    %46 = vset.pattern.permute.xlu0 0
    %47 = vperm.xlu0 %46, %v42
    %v48 = vpop.permute.xlu0 %47
    %v50 = vlaneseq
    %v51 = vshrl.u32 %v50, 7
    %v52 = vsub.s32 0, %v51
    %v53 = vrot.slane %v43, %v52
    %v54 = vmul.f32 %v48, %v53
    %v56 = vlaneseq
    %v57 = vshrl.u32 %v56, 7
    %v58 = vsub.s32 0, %v57
    %v59 = vrot.slane %v44, %v58
    %v61 = vadd.f32 %v59, %v54
    %62 = vset.pattern.permute.xlu0 1
    %63 = vperm.xlu0 %62, %v42
    %v64 = vpop.permute.xlu0 %63
    %v66 = vlaneseq
    %v67 = vshrl.u32 %v66, 7
    %v68 = vsub.s32 1, %v67
    %v69 = vrot.slane %v43, %v68
    %v70 = vmul.f32 %v64, %v69
    %v71 = vadd.f32 %v61, %v70
    %72 = vset.pattern.permute.xlu0 2
    %73 = vperm.xlu0 %72, %v42
    %v74 = vpop.permute.xlu0 %73
    %v76 = vlaneseq
    %v77 = vshrl.u32 %v76, 7
    %v78 = vsub.s32 2, %v77
    %v79 = vrot.slane %v43, %v78
    %v80 = vmul.f32 %v74, %v79
    %v81 = vadd.f32 %v71, %v80
    %82 = vset.pattern.permute.xlu0 3
    %83 = vperm.xlu0 %82, %v42
    %v84 = vpop.permute.xlu0 %83
    %v86 = vlaneseq
    %v87 = vshrl.u32 %v86, 7
    %v88 = vsub.s32 3, %v87
    %v89 = vrot.slane %v43, %v88
    %v90 = vmul.f32 %v84, %v89
    %v91 = vadd.f32 %v81, %v90
    %v92 = vmax.f32 %v91, 0.0
    %v93 = vand.u32 2147483647, %v91
    %v94 = vsub.f32 0.0, %v93
    %v95 = vmul.f32 %v94, 1.442695
    %v96 = vpow.pop %v95
    %v97 = vadd.f32 %v96, 1.0
    %v98 = vlog2.pop %v97
    %v99 = vmul.f32 %v98, 0.6931472
    %v100 = vmul.f32 -0.5, %v96
    %v101 = vadd.f32 %v100, 1.0
    %v102 = vmul.f32 %v101, %v96
    %v103 = vand.u32 2147483647, %v96
    %vm104 = vcmp.lt.f32.partialorder %v103, 0.0004427343
    %v105 = vsel %vm104, %v102, %v99
    %v106 = vadd.f32 %v92, %v105
    %v107 = vld [vmem:[#allocation3] sm:$0xff]
    %v108 = vld [vmem:[#allocation3 + $0x8] sm:$0xff]
    %v109 = vld [vmem:[#allocation3 + $0x10] sm:$0xff]
    %v110 = vld [vmem:[#allocation3 + $0x18] sm:$0xff]
    %v111 = vld [vmem:[%s4] sm:$0x1]
    %v113 = vlaneseq
    %v114 = vshrl.u32 %v113, 7
    %v115 = vsub.s32 0, %v114
    %v116 = vrot.slane %v111, %v115
    %vm118 = vcmask 261120
    %v120 = vsel %vm118, %v106, 0
    %122 = vmatprep.subr.mxu0 0.0
    %123 = vmatpush1.msra.mxu0 %v107
    %124 = vmatprep.subr.mxu0 0.0
    %125 = vmatpush1.msra.mxu0 %v108
    %126 = vmatprep.subr.mxu0 0.0
    %127 = vmatpush1.msra.mxu0 %v109
    %128 = vmatprep.subr.mxu0 0.0
    %129 = vmatpush1.msra.mxu0 %v110
    %130 = vmatprep.subr.mxu0 0.0
    %131 = vmatpush1.msra.mxu0 0.0
    %132 = vmatprep.subr.mxu0 0.0
    %133 = vmatpush1.msra.mxu0 0.0
    %134 = vmatprep.subr.mxu0 0.0
    %135 = vmatpush1.msra.mxu0 0.0
    %136 = vmatprep.subr.mxu0 0.0
    %137 = vmatpush1.msra.mxu0 0.0
    %138 = vmatprep.subr.mxu0 0.0
    %139 = vmatpush1.msra.mxu0 0.0
    %140 = vmatprep.subr.mxu0 0.0
    %141 = vmatpush1.msra.mxu0 0.0
    %142 = vmatprep.subr.mxu0 0.0
    %143 = vmatpush1.msra.mxu0 0.0
    %144 = vmatprep.subr.mxu0 0.0
    %145 = vmatpush1.msra.mxu0 0.0
    %146 = vmatprep.subr.mxu0 0.0
    %147 = vmatpush1.msra.mxu0 0.0
    %148 = vmatprep.subr.mxu0 0.0
    %149 = vmatpush1.msra.mxu0 0.0
    %150 = vmatprep.subr.mxu0 0.0
    %151 = vmatpush1.msra.mxu0 0.0
    %152 = vmatprep.subr.mxu0 0.0
    %153 = vmatpush1.msra.mxu0 0.0
    %154 = vmatprep.subr.mxu0 0.0
    %155 = vmatpush1.msra.mxu0 0.0
    %156 = vmatprep.subr.mxu0 0.0
    %157 = vmatpush1.msra.mxu0 0.0
    %158 = vmatprep.subr.mxu0 0.0
    %159 = vmatpush1.msra.mxu0 0.0
    %160 = vmatprep.subr.mxu0 0.0
    %161 = vmatpush1.msra.mxu0 0.0
    %162 = vmatprep.subr.mxu0 0.0
    %163 = vmatpush1.msra.mxu0 0.0
    %164 = vmatprep.subr.mxu0 0.0
    %165 = vmatpush1.msra.mxu0 0.0
    %166 = vmatprep.subr.mxu0 0.0
    %167 = vmatpush1.msra.mxu0 0.0
    %168 = vmatprep.subr.mxu0 0.0
    %169 = vmatpush1.msra.mxu0 0.0
    %170 = vmatprep.subr.mxu0 0.0
    %171 = vmatpush1.msra.mxu0 0.0
    %172 = vmatprep.subr.mxu0 0.0
    %173 = vmatpush1.msra.mxu0 0.0
    %174 = vmatprep.subr.mxu0 0.0
    %175 = vmatpush1.msra.mxu0 0.0
    %176 = vmatprep.subr.mxu0 0.0
    %177 = vmatpush1.msra.mxu0 0.0
    %178 = vmatprep.subr.mxu0 0.0
    %179 = vmatpush1.msra.mxu0 0.0
    %180 = vmatprep.subr.mxu0 0.0
    %181 = vmatpush1.msra.mxu0 0.0
    %182 = vmatprep.subr.mxu0 0.0
    %183 = vmatpush1.msra.mxu0 0.0
    %184 = vmatprep.subr.mxu0 0.0
    %185 = vmatpush1.msra.mxu0 0.0
    %186 = vmatprep.mubr.f32.mxu0 0.0
    %187 = vmatmul.mubr.f32.gmra.mrb[0].mxu0 %v120
    %v188 = vpop.f32.mrb[0].mxu0
    %v189 = vadd.f32 %v116, %v188
    %v190 = vpop.f32.mrb[0].mxu0
    %191 = vdwg.mxu0
    %v192 = vmax.f32 %v189, 0.0
    %v193 = vand.u32 2147483647, %v189
    %v194 = vsub.f32 0.0, %v193
    %v195 = vmul.f32 %v194, 1.442695
    %v196 = vpow.pop %v195
    %v197 = vadd.f32 %v196, 1.0
    %v198 = vlog2.pop %v197
    %v199 = vmul.f32 %v198, 0.6931472
    %v200 = vmul.f32 -0.5, %v196
    %v201 = vadd.f32 %v200, 1.0
    %v202 = vmul.f32 %v201, %v196
    %v203 = vand.u32 2147483647, %v196
    %vm204 = vcmp.lt.f32.partialorder %v203, 0.0004427343
    %v205 = vsel %vm204, %v202, %v199
    %v206 = vadd.f32 %v192, %v205
    %v207 = vld [vmem:[%s5] sm:$0x1]
    %v208 = vld [vmem:[#allocation2] sm:$0x1]
    %v210 = vlaneseq
    %v211 = vshrl.u32 %v210, 7
    %v212 = vsub.s32 0, %v211
    %v213 = vrot.slane %v207, %v212
    %v215 = vmul.f32 %v206, %v213
    %v216 = vsel %vm118, %v215, 0.0
    %217 = vadd.xlane.f32.xlu0 %v216
    %v218 = vpop.xlane.xlu0 %217
    %v220 = vlaneseq
    %v221 = vshrl.u32 %v220, 7
    %v222 = vsub.s32 0, %v221
    %v223 = vrot.slane %v208, %v222
    %v225 = vadd.f32 %v218, %v223
    %vm226 = vcmask 7168
    %227 = vst.msk [vmem:[#allocation5] sm:$0xff] %vm226, %v225
    // Predicated region
    $region34: #{tpu_custom_call.1} parent=1 // pred_check
      _
    $region35: #{tpu_custom_call.1} parent=1 // pred_check_branch
      %229 = sbr.rel (0) target = $region37
    $region36: #{tpu_custom_call.1} parent=1 // pred_region
      // Predicated region
      $region38: #{tpu_custom_call.1} parent=36 // pred_check
        _
      $region39: #{tpu_custom_call.1} parent=36 // pred_check_branch
        %231 = sbr.rel (0) target = $region41
      $region40: #{tpu_custom_call.1} parent=36 // pred_region
        // Predicated region
        $region42: #{tpu_custom_call.1} parent=40 // pred_check
          _
        $region43: #{tpu_custom_call.1} parent=40 // pred_check_branch
          %233 = sbr.rel target = $region45
        $region44: #{tpu_custom_call.1} parent=40 // pred_region
          // Predicated region
          $region57: #{tpu_custom_call.1} parent=44 // pred_check
            _
          $region58: #{tpu_custom_call.1} parent=44 // pred_check_branch
            %248 = sbr.rel (0) target = $region60
          $region59: #{tpu_custom_call.1} parent=44 // pred_region
            loop: start=0, step=1, limit=1
            $region61: #{tpu_custom_call.1} parent=59 // loop_pre_header
              _
            $region62: #{tpu_custom_call.1} parent=59 // loop_header
              %s251 = sphi 0, %s255
              %p252 = scmp.ge.s32.totalorder %s251, 1
              %s256 = sphi [#allocation5], [#allocation5]
              %s257 = sphi %s7, %s7
            $region63: #{tpu_custom_call.1} parent=59 // loop_header_branch
              %254 = sbr.rel (%p252) target = $region67
            $region64: #{tpu_custom_call.1} parent=59 // loop_body
              %v258 = vld [vmem:[%s256] sm:$0x3]
              %259 = vst [vmem:[%s257] sm:$0x3] %v258
            $region65: #{tpu_custom_call.1} parent=59 // loop_footer
              %s255 = sadd.s32 1, %s251
            $region66: #{tpu_custom_call.1} parent=59 // loop_footer_branch
              %250 = sbr.rel target = $region62
            $region67: #{tpu_custom_call.1} parent=59 // loop_exit
              _
          $region60: #{tpu_custom_call.1} parent=44 // pred_fallthru
            _
        $region45: #{tpu_custom_call.1} parent=40 // pred_fallthru
          _
        // Predicated region
        $region46: #{tpu_custom_call.1} parent=40 // pred_check
          _
        $region47: #{tpu_custom_call.1} parent=40 // pred_check_branch
          %235 = sbr.rel (0) target = $region49
        $region48: #{tpu_custom_call.1} parent=40 // pred_region
          loop: start=0, step=1, limit=1
          $region50: #{tpu_custom_call.1} parent=48 // loop_pre_header
            _
          $region51: #{tpu_custom_call.1} parent=48 // loop_header
            %s238 = sphi 0, %s242
            %p239 = scmp.ge.s32.totalorder %s238, 1
            %s243 = sphi [#allocation5], [#allocation5]
            %s244 = sphi %s7, %s7
          $region52: #{tpu_custom_call.1} parent=48 // loop_header_branch
            %241 = sbr.rel (%p239) target = $region56
          $region53: #{tpu_custom_call.1} parent=48 // loop_body
            %v245 = vld [vmem:[%s243] sm:$0x3]
            %246 = vst [vmem:[%s244] sm:$0x3] %v245
          $region54: #{tpu_custom_call.1} parent=48 // loop_footer
            %s242 = sadd.s32 1, %s238
          $region55: #{tpu_custom_call.1} parent=48 // loop_footer_branch
            %237 = sbr.rel target = $region51
          $region56: #{tpu_custom_call.1} parent=48 // loop_exit
            _
        $region49: #{tpu_custom_call.1} parent=40 // pred_fallthru
          _
      $region41: #{tpu_custom_call.1} parent=36 // pred_fallthru
        _
      %260 = vnop
    $region37: #{tpu_custom_call.1} parent=1 // pred_fallthru
      _
    // Predicated region
    $region68: #{tpu_custom_call.1} parent=1 // pred_check
      _
    $region69: #{tpu_custom_call.1} parent=1 // pred_check_branch
      %262 = sbr.rel (0) target = $region71
    $region70: #{tpu_custom_call.1} parent=1 // pred_region
      _
    $region71: #{tpu_custom_call.1} parent=1 // pred_fallthru
      _
    %263 = vsyncpa [#allocation4], 1

</llo_original>
